<compile_context>
chip_gen: v5e
topology: v5e:2x2
jax: 0.10.0
libtpu: 0.0.40
codegen_flags: <defaults>
</compile_context>

<pallas_src>
import functools

import jax
import jax.numpy as jnp
from jax.experimental import pallas as pl
from jax.experimental.pallas import tpu as pltpu


def _basic_conv2d_kernel(x_ref, wb_ref, shift_ref, o_ref, *, Ho, KH):
    """One batch element per grid step.

    x_ref:     (1, Hp, Wp*Cin)        padded input, (W, Cin) flattened onto lanes, bf16
    wb_ref:    (KH, Wp*Cin, Wo*Cout)  banded (Toeplitz) weights, BN scale folded in, bf16
    shift_ref: (1, Wo*Cout)           fused BN shift tiled over output width, f32
    o_ref:     (1, Ho, Wo*Cout)       output block, lane-dense last dim, f32
    """
    # KH small matmuls on the MXU; each LHS is a plain sublane-offset slice
    # (no reshape, no VMEM copy).  Accumulate in f32.
    acc = jnp.dot(x_ref[0, 0:Ho, :], wb_ref[0],
                  preferred_element_type=jnp.float32)
    for kh in range(1, KH):
        acc = acc + jnp.dot(x_ref[0, kh:kh + Ho, :], wb_ref[kh],
                            preferred_element_type=jnp.float32)

    # Fused BatchNorm shift + ReLU (f32 epilogue).
    y = jnp.maximum(acc + shift_ref[...], 0.0)
    o_ref[...] = y[None].astype(o_ref.dtype)


def basic_conv2d(x_nchw, weight, gamma, beta, running_mean, running_var,
                 *, padding=1, eps=1e-3):
    """Forward of BasicConv2d.  x_nchw: (N, Cin, H, W), weight: (Cout, Cin, KH, KW).

    stride=1 only (matches the modeled instantiation).
    """
    N, Cin, H, W = x_nchw.shape
    Cout, _, KH, KW = weight.shape
    Hp, Wp = H + 2 * padding, W + 2 * padding
    Ho, Wo = Hp - KH + 1, Wp - KW + 1

    f32 = jnp.float32
    # ---- BN folding (eval mode): y = scale * conv(x) + shift ----
    scale = (gamma.astype(f32) / jnp.sqrt(running_var.astype(f32) + eps))
    shift = beta.astype(f32) - running_mean.astype(f32) * scale

    # ---- layout glue: NCHW -> NHWC, spatial pad, flatten (W, Cin) -> lanes, bf16 ----
    x_nhwc = jnp.transpose(x_nchw, (0, 2, 3, 1))
    x_pad = jnp.pad(x_nhwc, ((0, 0), (padding, padding), (padding, padding), (0, 0)))
    x_flat = x_pad.reshape(N, Hp, Wp * Cin).astype(jnp.bfloat16)

    # ---- banded (Toeplitz) weights with BN scale folded in ----
    # W_band[kh, wi*Cin+ci, wo*Cout+co] =
    #   scale[co] * weight[co, ci, kh, wi-wo]   if 0 <= wi-wo < KW else 0
    wk = jnp.transpose(weight.astype(f32) * scale[:, None, None, None],
                       (2, 3, 1, 0))                              # (KH, KW, Cin, Cout)
    wi = jnp.arange(Wp)[:, None]                                  # (Wp, 1)
    wo = jnp.arange(Wo)[None, :]                                  # (1, Wo)
    d = wi - wo                                                   # (Wp, Wo)
    valid = ((d >= 0) & (d < KW)).astype(f32)
    band = wk[:, jnp.clip(d, 0, KW - 1)]                          # (KH, Wp, Wo, Cin, Cout)
    band = band * valid[None, :, :, None, None]
    w_band = jnp.transpose(band, (0, 1, 3, 2, 4)).reshape(
        KH, Wp * Cin, Wo * Cout).astype(jnp.bfloat16)             # (KH, Wp*Cin, Wo*Cout)

    shift_row = jnp.tile(shift, Wo).reshape(1, Wo * Cout)         # (1, Wo*Cout), f32

    kernel = functools.partial(_basic_conv2d_kernel, Ho=Ho, KH=KH)

    out_flat = pl.pallas_call(
        kernel,
        out_shape=jax.ShapeDtypeStruct((N, Ho, Wo * Cout), jnp.float32),
        grid_spec=pltpu.PrefetchScalarGridSpec(
            num_scalar_prefetch=0,
            grid=(N,),
            in_specs=[
                pl.BlockSpec((1, Hp, Wp * Cin), lambda n: (n, 0, 0)),
                pl.BlockSpec((KH, Wp * Cin, Wo * Cout), lambda n: (0, 0, 0)),
                pl.BlockSpec((1, Wo * Cout), lambda n: (0, 0)),
            ],
            out_specs=pl.BlockSpec((1, Ho, Wo * Cout), lambda n: (n, 0, 0)),
        ),
        compiler_params=pltpu.CompilerParams(
            dimension_semantics=("parallel",),
            vmem_limit_bytes=32 * 1024 * 1024,
        ),
    )(x_flat, w_band, shift_row)

    # (N, Ho, Wo*Cout) -> (N, Ho, Wo, Cout) is a contiguous (free) reshape.
    out_nhwc = out_flat.reshape(N, Ho, Wo, Cout)
    return jnp.transpose(out_nhwc, (0, 3, 1, 2))  # back to NCHW for this module's API


def _reference(x_nchw, weight, gamma, beta, running_mean, running_var,
               *, padding=1, eps=1e-3):
    """Plain-JAX f32 reference for correctness check."""
    y = jax.lax.conv_general_dilated(
        x_nchw.astype(jnp.float32), weight.astype(jnp.float32),
        window_strides=(1, 1), padding=[(padding, padding), (padding, padding)],
        dimension_numbers=("NCHW", "OIHW", "NCHW"))
    scale = gamma / jnp.sqrt(running_var + eps)
    shift = beta - running_mean * scale
    y = y * scale[None, :, None, None] + shift[None, :, None, None]
    return jnp.maximum(y, 0.0)


if __name__ == "__main__":
    key = jax.random.PRNGKey(0)
    k_x, k_w = jax.random.split(key)

    N, Cin, H, W = 2, 4, 16, 16
    Cout, KH, KW = 8, 3, 3

    x = jax.random.normal(k_x, (N, Cin, H, W), dtype=jnp.float32)
    weight = jax.random.normal(k_w, (Cout, Cin, KH, KW), dtype=jnp.float32) * 0.1

    # BatchNorm2d default init (PyTorch): gamma=1, beta=0, running_mean=0, running_var=1.
    gamma = jnp.ones((Cout,), jnp.float32)
    beta = jnp.zeros((Cout,), jnp.float32)
    running_mean = jnp.zeros((Cout,), jnp.float32)
    running_var = jnp.ones((Cout,), jnp.float32)

    out = basic_conv2d(x, weight, gamma, beta, running_mean, running_var)
    out = jax.block_until_ready(out)

    ref = _reference(x, weight, gamma, beta, running_mean, running_var)
    assert out.shape == (N, Cout, H, W), out.shape
    # bf16 MXU inputs with f32 accumulation: compare against the f32 reference
    # with a correspondingly loosened tolerance.
    max_err = float(jnp.max(jnp.abs(out - ref)))
    assert jnp.allclose(out, ref, atol=3e-2, rtol=3e-2), max_err

    print("KERNEL_OK")
</pallas_src>

<mosaic_0001>
module attributes {stable_mosaic.version = 11 : i64} {
  func.func @_basic_conv2d_kernel(%arg0: i32, %arg1: memref<1x18x72xbf16, #tpu.memory_space<vmem>>, %arg2: memref<3x72x128xbf16, #tpu.memory_space<vmem>>, %arg3: memref<1x128xf32, #tpu.memory_space<vmem>>, %arg4: memref<1x16x128xf32, #tpu.memory_space<vmem>>) attributes {dimension_semantics = [#tpu.dimension_semantics<parallel>], iteration_bounds = array<i64: 2>, scalar_prefetch = 0 : i64, scratch_operands = 0 : i64, tpu.core_type = #tpu.core_type<tc>, window_params = [{transform_indices = @transform_0, window_bounds = array<i64: 1, 18, 72>}, {pipeline_mode = #tpu.pipeline_mode<synchronous>, transform_indices = @transform_1, window_bounds = array<i64: 3, 72, 128>}, {pipeline_mode = #tpu.pipeline_mode<synchronous>, transform_indices = @transform_2, window_bounds = array<i64: 1, 128>}, {transform_indices = @transform_3, window_bounds = array<i64: 1, 16, 128>}]} {
    %c0 = arith.constant 0 : index
    %c0_0 = arith.constant 0 : index
    %c0_1 = arith.constant 0 : index
    %0 = vector.load %arg1[%c0, %c0_0, %c0_1] : memref<1x18x72xbf16, #tpu.memory_space<vmem>>, vector<1x16x72xbf16>
    %1 = vector.shape_cast %0 : vector<1x16x72xbf16> to vector<16x72xbf16>
    %c0_2 = arith.constant 0 : index
    %c0_3 = arith.constant 0 : index
    %c0_4 = arith.constant 0 : index
    %2 = vector.load %arg2[%c0_2, %c0_3, %c0_4] : memref<3x72x128xbf16, #tpu.memory_space<vmem>>, vector<1x72x128xbf16>
    %3 = vector.shape_cast %2 : vector<1x72x128xbf16> to vector<72x128xbf16>
    %cst = arith.constant dense<0.000000e+00> : vector<16x128xf32>
    %4 = tpu.matmul %1, %3, %cst {dimension_numbers = #tpu.dot_dimension_numbers<[1], [0], [0], [1], [0, 0, 1, 1], [], []>} : vector<16x72xbf16>, vector<72x128xbf16>, vector<16x128xf32> -> vector<16x128xf32>
    %c0_5 = arith.constant 0 : index
    %c1 = arith.constant 1 : index
    %c0_6 = arith.constant 0 : index
    %5 = vector.load %arg1[%c0_5, %c1, %c0_6] : memref<1x18x72xbf16, #tpu.memory_space<vmem>>, vector<1x16x72xbf16>
    %6 = vector.shape_cast %5 : vector<1x16x72xbf16> to vector<16x72xbf16>
    %c1_7 = arith.constant 1 : index
    %c0_8 = arith.constant 0 : index
    %c0_9 = arith.constant 0 : index
    %7 = vector.load %arg2[%c1_7, %c0_8, %c0_9] : memref<3x72x128xbf16, #tpu.memory_space<vmem>>, vector<1x72x128xbf16>
    %8 = vector.shape_cast %7 : vector<1x72x128xbf16> to vector<72x128xbf16>
    %cst_10 = arith.constant dense<0.000000e+00> : vector<16x128xf32>
    %9 = tpu.matmul %6, %8, %cst_10 {dimension_numbers = #tpu.dot_dimension_numbers<[1], [0], [0], [1], [0, 0, 1, 1], [], []>} : vector<16x72xbf16>, vector<72x128xbf16>, vector<16x128xf32> -> vector<16x128xf32>
    %10 = arith.addf %4, %9 : vector<16x128xf32>
    %c0_11 = arith.constant 0 : index
    %c2 = arith.constant 2 : index
    %c0_12 = arith.constant 0 : index
    %11 = vector.load %arg1[%c0_11, %c2, %c0_12] : memref<1x18x72xbf16, #tpu.memory_space<vmem>>, vector<1x16x72xbf16>
    %12 = vector.shape_cast %11 : vector<1x16x72xbf16> to vector<16x72xbf16>
    %c2_13 = arith.constant 2 : index
    %c0_14 = arith.constant 0 : index
    %c0_15 = arith.constant 0 : index
    %13 = vector.load %arg2[%c2_13, %c0_14, %c0_15] : memref<3x72x128xbf16, #tpu.memory_space<vmem>>, vector<1x72x128xbf16>
    %14 = vector.shape_cast %13 : vector<1x72x128xbf16> to vector<72x128xbf16>
    %cst_16 = arith.constant dense<0.000000e+00> : vector<16x128xf32>
    %15 = tpu.matmul %12, %14, %cst_16 {dimension_numbers = #tpu.dot_dimension_numbers<[1], [0], [0], [1], [0, 0, 1, 1], [], []>} : vector<16x72xbf16>, vector<72x128xbf16>, vector<16x128xf32> -> vector<16x128xf32>
    %16 = arith.addf %10, %15 : vector<16x128xf32>
    %c0_17 = arith.constant 0 : index
    %c0_18 = arith.constant 0 : index
    %17 = vector.load %arg3[%c0_17, %c0_18] : memref<1x128xf32, #tpu.memory_space<vmem>>, vector<1x128xf32>
    %18 = vector.broadcast %17 : vector<1x128xf32> to vector<16x128xf32>
    %19 = arith.addf %16, %18 : vector<16x128xf32>
    %cst_19 = arith.constant 0.000000e+00 : f32
    %20 = vector.broadcast %cst_19 : f32 to vector<16x128xf32>
    %21 = arith.maximumf %19, %20 : vector<16x128xf32>
    %22 = vector.shape_cast %21 : vector<16x128xf32> to vector<1x16x128xf32>
    %c0_20 = arith.constant 0 : index
    %c0_21 = arith.constant 0 : index
    %c0_22 = arith.constant 0 : index
    %23 = vector.load %arg4[%c0_20, %c0_21, %c0_22] : memref<1x16x128xf32, #tpu.memory_space<vmem>>, vector<1x16x128xf32>
    tpu.vector_store %arg4[%c0_20, %c0_21, %c0_22], %22 {strides = array<i32>} : memref<1x16x128xf32, #tpu.memory_space<vmem>>, vector<1x16x128xf32>,
    return
  }
  func.func @transform_0(%arg0: i32) -> (i32, i32, i32) {
    %c0_i32 = arith.constant 0 : i32
    %c0_i32_0 = arith.constant 0 : i32
    %c0_i32_1 = arith.constant 0 : i32
    return %arg0, %c0_i32, %c0_i32_0 : i32, i32, i32
  }
  func.func @transform_1(%arg0: i32) -> (i32, i32, i32) {
    %c0_i32 = arith.constant 0 : i32
    %c0_i32_0 = arith.constant 0 : i32
    %c0_i32_1 = arith.constant 0 : i32
    %c0_i32_2 = arith.constant 0 : i32
    return %c0_i32, %c0_i32_0, %c0_i32_1 : i32, i32, i32
  }
  func.func @transform_2(%arg0: i32) -> (i32, i32) {
    %c0_i32 = arith.constant 0 : i32
    %c0_i32_0 = arith.constant 0 : i32
    %c0_i32_1 = arith.constant 0 : i32
    return %c0_i32, %c0_i32_0 : i32, i32
  }
  func.func @transform_3(%arg0: i32) -> (i32, i32, i32) {
    %c0_i32 = arith.constant 0 : i32
    %c0_i32_0 = arith.constant 0 : i32
    %c0_i32_1 = arith.constant 0 : i32
    return %arg0, %c0_i32, %c0_i32_0 : i32, i32, i32
  }
}

</mosaic_0001>

<llo_original>
// kernel: tpu_custom_call.1
$region0: #{tpu_custom_call.1}
  #allocation0 [shape = 'u32[]', space=smem, size = 0x4, offset = 0x4, fixed_abs, tag = 'smem constant byte address 0x4 - core index']
  #allocation1 [shape = 'u32[72,128]{1,0:T(1,128)}', space=vmem, size = 0x9000, scoped, tag = 'internal scratch']
  %s0 = inlined_call_operand.vmem [shape: bf16[2,18,72], index: 0, kind: input, shape index: {}]
  %s1 = inlined_call_operand.hbm [shape: bf16[3,72,128], index: 1, kind: input, shape index: {}]
  %s2 = inlined_call_operand.vmem [shape: f32[1,128], index: 2, kind: input, shape index: {}]
  %s3 = inlined_call_operand.hbm [shape: f32[2,16,128], index: 3, kind: output, shape index: {}]
  %s4 = sld [smem:[#allocation0]]
  $region49: #{tpu_custom_call.1} parent=0
    _
  %s6 = ssub.s32 1, %s4
  %s7 = scalar_select 0, %s6, %s4
  $region1: #{tpu_custom_call.1} parent=0
    #allocation2 [shape = 'u8[55296]{0}', space=vmem, size = 0xd800, scoped, tag = 'input window, operand 1, single buffered']
    #allocation3 [shape = 's32[2]{0}', space=sflag, size = 0x8, scoped, tag = 'scoped memory for tpu_custom_call.1']
    #allocation4 [shape = 's32[2]{0}', space=sflag, size = 0x8, scoped, tag = 'scoped memory for tpu_custom_call.1']
    #allocation5 [shape = 'u8[16384]{0}', space=vmem, size = 0x4000, scoped, tag = 'output window, operand 0']
    %8 = vsyncpa [#allocation3], 0
    %9 = vsyncpa [#allocation4], 0
    %s10 = scalar_lea.sflag [#allocation4], 1
    %11 = vsyncpa %s10, 0
    loop: start=0, step=1, limit=4
    $region2: #{tpu_custom_call.1} parent=1 // loop_pre_header
      _
    $region3: #{tpu_custom_call.1} parent=1 // loop_header
      %s13 = sphi 0, %s17
      %p14 = scmp.ge.s32.totalorder %s13, 4
      %s23 = sphi 0, %s25
      %s26 = sphi 0, %s23
      %s27 = sphi 0, %s26
      %s43 = sphi 0, %s27
      %s47 = sphi 0, %s47
      %s49 = sphi 0, %s47
      %s50 = sphi 0, %s49
      %s64 = sphi 0, %s50
      %s68 = sphi 0, %s68
      %s70 = sphi 0, %s68
      %s71 = sphi 0, %s70
      %s85 = sphi 0, %s71
      %s91 = sphi 0, %s93
      %s94 = sphi 0, %s91
      %s95 = sphi 0, %s94
      %s111 = sphi 0, %s95
    $region4: #{tpu_custom_call.1} parent=1 // loop_header_branch
      %16 = sbr.rel (%p14) target = $region8
    $region5: #{tpu_custom_call.1} parent=1 // loop_body
      %s18 = ssub.s32 %s13, 1
      %s19 = ssub.s32 %s13, 2
      %s20 = sadd.s32 %s13, 1
      %s21 = ssub.s32 %s13, %s20
      %p22 = scmp.eq.s32.totalorder %s21, 0
      %s24 = sadd.s32 %s23, 1
      %s25 = scalar_select %p22, %s23, %s24
      %p28 = pneg %p22
      %p29 = scmp.eq.s32.totalorder %s13, 1
      %p30 = por %p28, %p29
      %p31 = scmp.ne.s32.totalorder %s23, %s26
      %p32 = scmp.eq.s32.totalorder %s13, 0
      %p33 = por %p31, %p32
      %p34 = scmp.ne.s32.totalorder %s23, %s26
      %p35 = scmp.eq.s32.totalorder %s18, 1
      %p36 = por %p34, %p35
      %p37 = scmp.ne.s32.totalorder %s26, %s27
      %p38 = scmp.eq.s32.totalorder %s18, 0
      %p39 = por %p37, %p38
      %p40 = scmp.ne.s32.totalorder %s26, %s27
      %p41 = scmp.eq.s32.totalorder %s19, 1
      %p42 = por %p40, %p41
      %p44 = scmp.ne.s32.totalorder %s27, %s43
      %p45 = scmp.eq.s32.totalorder %s19, 0
      %p46 = por %p44, %p45
      %s48 = sadd.s32 %s47, 1
      %p51 = scmp.eq.s32.totalorder %s13, 1
      %p52 = scmp.ne.s32.totalorder %s47, %s49
      %p53 = scmp.eq.s32.totalorder %s13, 0
      %p54 = por %p52, %p53
      %p55 = scmp.ne.s32.totalorder %s47, %s49
      %p56 = scmp.eq.s32.totalorder %s18, 1
      %p57 = por %p55, %p56
      %p58 = scmp.ne.s32.totalorder %s49, %s50
      %p59 = scmp.eq.s32.totalorder %s18, 0
      %p60 = por %p58, %p59
      %p61 = scmp.ne.s32.totalorder %s49, %s50
      %p62 = scmp.eq.s32.totalorder %s19, 1
      %p63 = por %p61, %p62
      %p65 = scmp.ne.s32.totalorder %s50, %s64
      %p66 = scmp.eq.s32.totalorder %s19, 0
      %p67 = por %p65, %p66
      %s69 = sadd.s32 %s68, 1
      %p72 = scmp.eq.s32.totalorder %s13, 1
      %p73 = scmp.ne.s32.totalorder %s68, %s70
      %p74 = scmp.eq.s32.totalorder %s13, 0
      %p75 = por %p73, %p74
      %p76 = scmp.ne.s32.totalorder %s68, %s70
      %p77 = scmp.eq.s32.totalorder %s18, 1
      %p78 = por %p76, %p77
      %p79 = scmp.ne.s32.totalorder %s70, %s71
      %p80 = scmp.eq.s32.totalorder %s18, 0
      %p81 = por %p79, %p80
      %p82 = scmp.ne.s32.totalorder %s70, %s71
      %p83 = scmp.eq.s32.totalorder %s19, 1
      %p84 = por %p82, %p83
      %p86 = scmp.ne.s32.totalorder %s71, %s85
      %p87 = scmp.eq.s32.totalorder %s19, 0
      %p88 = por %p86, %p87
      %s89 = ssub.s32 %s13, %s20
      %p90 = scmp.eq.s32.totalorder %s89, 0
      %s92 = sadd.s32 %s91, 1
      %s93 = scalar_select %p90, %s91, %s92
      %p96 = pneg %p90
      %p97 = scmp.eq.s32.totalorder %s13, 1
      %p98 = por %p96, %p97
      %p99 = scmp.ne.s32.totalorder %s91, %s94
      %p100 = scmp.eq.s32.totalorder %s13, 0
      %p101 = por %p99, %p100
      %p102 = scmp.ne.s32.totalorder %s91, %s94
      %p103 = scmp.eq.s32.totalorder %s18, 1
      %p104 = por %p102, %p103
      %p105 = scmp.ne.s32.totalorder %s94, %s95
      %p106 = scmp.eq.s32.totalorder %s18, 0
      %p107 = por %p105, %p106
      %p108 = scmp.ne.s32.totalorder %s94, %s95
      %p109 = scmp.eq.s32.totalorder %s19, 1
      %p110 = por %p108, %p109
      %p112 = scmp.ne.s32.totalorder %s95, %s111
      %p113 = scmp.eq.s32.totalorder %s19, 0
      %p114 = por %p112, %p113
      %p115 = scmp.le.s32.totalorder 1, %s13
      %p116 = scmp.lt.s32.totalorder %s13, 3
      %p117 = pnand %p115, %p116
      %p118 = pneg %p117
      // Predicated region
      $region9: #{tpu_custom_call.1} parent=5 // pred_check
        _
      $region10: #{tpu_custom_call.1} parent=5 // pred_check_branch
        %120 = sbr.rel (%p117) target = $region12
      $region11: #{tpu_custom_call.1} parent=5 // pred_region
        %s121 = ssub.s32 %s13, 1
        // Predicated region
        $region13: #{tpu_custom_call.1} parent=11 // pred_check
          %p122 = pneg %p60
        $region14: #{tpu_custom_call.1} parent=11 // pred_check_branch
          %124 = sbr.rel (%p122) target = $region16
        $region15: #{tpu_custom_call.1} parent=11 // pred_region
          %126 = vsyncadd [#allocation3], 0
          %s127 = sshll.u32 %s1, 4
          %s128 = int_to_ptr.hbm [resolvable:$true] %s127
          %s129 = sshll.u32 [#allocation2], 4
          %s130 = int_to_ptr.vmem [resolvable:$true] %s129
          %135 = dma.hbm_to_vmem [thread:$0]  %s128, 1728, %s130, [#allocation3], 64, 64, 4
        $region16: #{tpu_custom_call.1} parent=11 // pred_fallthru
          _
        // Predicated region
        $region17: #{tpu_custom_call.1} parent=11 // pred_check
          %p136 = pneg %p81
        $region18: #{tpu_custom_call.1} parent=11 // pred_check_branch
          %138 = sbr.rel (%p136) target = $region20
        $region19: #{tpu_custom_call.1} parent=11 // pred_region
          _
        $region20: #{tpu_custom_call.1} parent=11 // pred_fallthru
          _
      $region12: #{tpu_custom_call.1} parent=5 // pred_fallthru
        _
      %p139 = scmp.lt.s32.totalorder %s13, 2
      // Predicated region
      $region21: #{tpu_custom_call.1} parent=5 // pred_check
        %p140 = pneg %p139
      $region22: #{tpu_custom_call.1} parent=5 // pred_check_branch
        %142 = sbr.rel (%p140) target = $region24
      $region23: #{tpu_custom_call.1} parent=5 // pred_region
        // Predicated region
        $region25: #{tpu_custom_call.1} parent=23 // pred_check
          %p143 = pneg %p33
        $region26: #{tpu_custom_call.1} parent=23 // pred_check_branch
          %145 = sbr.rel (%p143) target = $region28
        $region27: #{tpu_custom_call.1} parent=23 // pred_region
          %p146 = scmp.lt.s32.totalorder %s13, 1
          %s147 = scalar_select %p146, %s13, 1
          %s148 = smul.addr %s147, 3
          %s149 = smul.addr %s148, 4
          %s150 = scalar_lea.vmem %s0, %s149
        $region28: #{tpu_custom_call.1} parent=23 // pred_fallthru
          _
      $region24: #{tpu_custom_call.1} parent=5 // pred_fallthru
        _
      %p151 = scmp.le.s32.totalorder 1, %s13
      %p152 = scmp.lt.s32.totalorder %s13, 3
      %p153 = pnand %p151, %p152
      %p154 = pneg %p153
      // Predicated region
      $region29: #{tpu_custom_call.1} parent=5 // pred_check
        _
      $region30: #{tpu_custom_call.1} parent=5 // pred_check_branch
        %156 = sbr.rel (%p153) target = $region32
      $region31: #{tpu_custom_call.1} parent=5 // pred_region
        %s157 = ssub.s32 %s13, 1
        // Predicated region
        $region33: #{tpu_custom_call.1} parent=31 // pred_check
          %p158 = pneg %p60
        $region34: #{tpu_custom_call.1} parent=31 // pred_check_branch
          %160 = sbr.rel (%p158) target = $region36
        $region35: #{tpu_custom_call.1} parent=31 // pred_region
          %162 = dma.done [#allocation3], 1728
        $region36: #{tpu_custom_call.1} parent=31 // pred_fallthru
          _
        %p163 = scmp.lt.s32.totalorder %s18, 1
        %s164 = scalar_select %p163, %s18, 1
        %s165 = smul.addr %s164, 3
        %s166 = smul.addr %s165, 4
        %s167 = scalar_lea.vmem %s0, %s166
        %p168 = pneg %p39
        %p169 = pneg %p36
        %p170 = pneg %p60
        %p171 = pneg %p57
        %p172 = pneg %p81
        %p173 = pneg %p78
        %p174 = pneg %p107
        %p175 = pneg %p104
        %s176 = sand.u32 %s94, 1
        %s177 = scalar_lea.sflag [#allocation4], %s176
        %s178 = sand.u32 %s94, 1
        %s179 = smul.addr %s178, 16
        %s180 = scalar_lea.vmem [#allocation5], %s179
        %p181 = scmp.lt.s32.totalorder %s18, 1
        %s182 = scalar_select %p181, %s18, 1
        %s183 = smul.addr %s182, 3
        %s184 = smul.addr %s183, 4
        %s185 = scalar_lea.vmem %s0, %s184
        %v187 = vld [vmem:[%s185] sm:$0xf]
        %v188 = vld [vmem:[%s185 + $0x4] sm:$0xf]
        %v189 = vld [vmem:[#allocation2] sm:$0xf]
        %v190 = vld [vmem:[#allocation2 + $0x4] sm:$0xf]
        %v191 = vld [vmem:[#allocation2 + $0x8] sm:$0xf]
        %v192 = vld [vmem:[#allocation2 + $0xc] sm:$0xf]
        %v193 = vld [vmem:[#allocation2 + $0x10] sm:$0xf]
        %v194 = vld [vmem:[#allocation2 + $0x14] sm:$0xf]
        %v195 = vld [vmem:[#allocation2 + $0x18] sm:$0xf]
        %v196 = vld [vmem:[#allocation2 + $0x1c] sm:$0xf]
        %v197 = vld [vmem:[#allocation2 + $0x20] sm:$0xf]
        %v198 = vld [vmem:[%s185 + $0x8] sm:$0x1]
        %s199 = scalar_lea.vmem [#allocation2], 36
        %v200 = vld [vmem:[%s199] sm:$0xf]
        %v201 = vld [vmem:[%s199 + $0x4] sm:$0xf]
        %v202 = vld [vmem:[%s199 + $0x8] sm:$0xf]
        %v203 = vld [vmem:[%s199 + $0xc] sm:$0xf]
        %v204 = vld [vmem:[%s199 + $0x10] sm:$0xf]
        %v205 = vld [vmem:[%s199 + $0x14] sm:$0xf]
        %v206 = vld [vmem:[%s199 + $0x18] sm:$0xf]
        %v207 = vld [vmem:[%s199 + $0x1c] sm:$0xf]
        %v208 = vld [vmem:[%s199 + $0x20] sm:$0xf]
        %v212 = vunpack.c.l.b16 %v187
        %v213 = vunpack.c.l.b16 %v188
        %v214 = vunpack.c.l.b16 %v198
        %v215 = vpack.c.b16 %v213, %v212
        %v216 = vpack.c.b16 %v214, %v214
        %vm217 = vsmask.f32 7424
        %v219 = vshrl.u32 %v215, 16
        %v221 = vshll.u32 %v215, 16
        %v223 = vrot.slane %v221, 1
        %v224 = vor.u32 %v219, %v223
        %v226 = vshll.u32 %v216, 16
        %v228 = vrot.slane %v226, 1
        %v229 = vsel %vm217, %v224, %v228
        %v239 = vunpack.c.l.b16 %v200
        %v240 = vunpack.c.l.b16 %v201
        %v241 = vunpack.c.l.b16 %v202
        %v242 = vunpack.c.l.b16 %v203
        %v243 = vunpack.c.l.b16 %v204
        %v244 = vunpack.c.l.b16 %v205
        %v245 = vunpack.c.l.b16 %v206
        %v246 = vunpack.c.l.b16 %v207
        %v247 = vunpack.c.l.b16 %v208
        %v248 = vpack.c.b16 %v240, %v239
        %v249 = vpack.c.b16 %v242, %v241
        %v250 = vpack.c.b16 %v244, %v243
        %v251 = vpack.c.b16 %v246, %v245
        %v252 = vpack.c.b16 %v247, %v247
        %vm257 = vcmask 588800
        %v259 = vsel %vm257, %v229, 0
        %vm261 = vcmask 1043456
        %v263 = vsel %vm261, %v252, 0
        %265 = vmatpush.bf16.msra.mxu0 0
        %266 = vmatpush.bf16.msra.mxu0 0
        %267 = vmatpush.bf16.msra.mxu0 0
        %268 = vmatpush.bf16.msra.mxu0 %v263
        %269 = vmatpush.bf16.msra.mxu0 %v251
        %270 = vmatpush.bf16.msra.mxu0 %v250
        %271 = vmatpush.bf16.msra.mxu0 %v249
        %272 = vmatpush.bf16.msra.mxu0 %v248
        %273 = vmatmul.bf16.gmra.mxu0 %v259
        %v274 = vpop.f32.mrf.mxu0
        %v275 = vadd.f32 0.0, %v274
        %v276 = vpop.f32.mrf.mxu0
        %v277 = vadd.f32 0.0, %v276
        %278 = vdwg.mxu0
        %v288 = vunpack.c.l.b16 %v189
        %v289 = vunpack.c.l.b16 %v190
        %v290 = vunpack.c.l.b16 %v191
        %v291 = vunpack.c.l.b16 %v192
        %v292 = vunpack.c.l.b16 %v193
        %v293 = vunpack.c.l.b16 %v194
        %v294 = vunpack.c.l.b16 %v195
        %v295 = vunpack.c.l.b16 %v196
        %v296 = vunpack.c.l.b16 %v197
        %v297 = vpack.c.b16 %v289, %v288
        %v298 = vpack.c.b16 %v291, %v290
        %v299 = vpack.c.b16 %v293, %v292
        %v300 = vpack.c.b16 %v295, %v294
        %v301 = vpack.c.b16 %v296, %v296
        %v306 = vsel %vm257, %v215, 0
        %v309 = vsel %vm261, %v301, 0
        %311 = vmatpush.bf16.msra.mxu0 0
        %312 = vmatpush.bf16.msra.mxu0 0
        %313 = vmatpush.bf16.msra.mxu0 0
        %314 = vmatpush.bf16.msra.mxu0 %v309
        %315 = vmatpush.bf16.msra.mxu0 %v300
        %316 = vmatpush.bf16.msra.mxu0 %v299
        %317 = vmatpush.bf16.msra.mxu0 %v298
        %318 = vmatpush.bf16.msra.mxu0 %v297
        %319 = vmatmul.bf16.gmra.mxu0 %v306
        %v320 = vpop.f32.mrf.mxu0
        %v321 = vadd.f32 %v275, %v320
        %v322 = vpop.f32.mrf.mxu0
        %v323 = vadd.f32 %v277, %v322
        %324 = vdwg.mxu0
        %v325 = vld [vmem:[%s185] sm:$0xe]
        %s326 = scalar_lea.vmem [#allocation2], 72
        %v327 = vld [vmem:[%s326] sm:$0xf]
        %v328 = vld [vmem:[%s326 + $0x4] sm:$0xf]
        %v329 = vld [vmem:[%s326 + $0x8] sm:$0xf]
        %v330 = vld [vmem:[%s326 + $0xc] sm:$0xf]
        %v331 = vld [vmem:[%s326 + $0x10] sm:$0xf]
        %v332 = vld [vmem:[%s326 + $0x14] sm:$0xf]
        %v333 = vld [vmem:[%s326 + $0x18] sm:$0xf]
        %v334 = vld [vmem:[%s326 + $0x1c] sm:$0xf]
        %v335 = vld [vmem:[%s326 + $0x20] sm:$0xf]
        %v337 = vunpack.c.l.b16 %v325
        %v338 = vpack.c.b16 %v213, %v337
        %vm339 = vcmask 1046528
        %v340 = vrot.slane %v338, 1
        %v341 = vrot.slane %v216, 1
        %v342 = vsel %vm339, %v340, %v341
        %v352 = vunpack.c.l.b16 %v327
        %v353 = vunpack.c.l.b16 %v328
        %v354 = vunpack.c.l.b16 %v329
        %v355 = vunpack.c.l.b16 %v330
        %v356 = vunpack.c.l.b16 %v331
        %v357 = vunpack.c.l.b16 %v332
        %v358 = vunpack.c.l.b16 %v333
        %v359 = vunpack.c.l.b16 %v334
        %v360 = vunpack.c.l.b16 %v335
        %v361 = vpack.c.b16 %v353, %v352
        %v362 = vpack.c.b16 %v355, %v354
        %v363 = vpack.c.b16 %v357, %v356
        %v364 = vpack.c.b16 %v359, %v358
        %v365 = vpack.c.b16 %v360, %v360
        %v371 = vsel %vm257, %v342, 0
        %v374 = vsel %vm261, %v365, 0
        %376 = vmatpush.bf16.msra.mxu0 0
        %377 = vmatpush.bf16.msra.mxu0 0
        %378 = vmatpush.bf16.msra.mxu0 0
        %379 = vmatpush.bf16.msra.mxu0 %v374
        %380 = vmatpush.bf16.msra.mxu0 %v364
        %381 = vmatpush.bf16.msra.mxu0 %v363
        %382 = vmatpush.bf16.msra.mxu0 %v362
        %383 = vmatpush.bf16.msra.mxu0 %v361
        %384 = vmatmul.bf16.gmra.mxu0 %v371
        %v385 = vpop.f32.mrf.mxu0
        %v386 = vadd.f32 0.0, %v385
        %v387 = vpop.f32.mrf.mxu0
        %v388 = vadd.f32 0.0, %v387
        %389 = vdwg.mxu0
        %v390 = vadd.f32 %v321, %v386
        %v391 = vadd.f32 %v323, %v388
        %v392 = vld [vmem:[%s2] sm:$0x1]
        %v394 = vperm.slane %v392, 0
        %v396 = vadd.f32 %v390, %v394
        %v397 = vadd.f32 %v391, %v394
        %v398 = vmax.f32 %v396, 0.0
        %v399 = vmax.f32 %v397, 0.0
        %400 = vst [vmem:[%s180] sm:$0xff] %v398
        %401 = vst [vmem:[%s180 + $0x8] sm:$0xff] %v399
        %s402 = sand.u32 %s94, 1
        %s403 = scalar_lea.sflag [#allocation4], %s402
        %s404 = sand.u32 %s94, 1
        %s405 = smul.addr %s404, 16
        %s406 = scalar_lea.vmem [#allocation5], %s405
        // Predicated region
        $region37: #{tpu_custom_call.1} parent=31 // pred_check
          %p407 = pneg %p104
        $region38: #{tpu_custom_call.1} parent=31 // pred_check_branch
          %409 = sbr.rel (%p407) target = $region40
        $region39: #{tpu_custom_call.1} parent=31 // pred_region
          %411 = vsyncadd %s403, 0
          %s412 = smul.addr %s18, 2
          %s413 = smul.addr %s412, 8
          %s414 = scalar_lea.hbm %s3, %s413
          %s415 = sshll.u32 %s406, 4
          %s416 = int_to_ptr.vmem [resolvable:$true] %s415
          %s417 = sshll.u32 %s414, 4
          %s418 = int_to_ptr.hbm [resolvable:$true] %s417
          %423 = dma.vmem_to_hbm [thread:$0]  %s416, 256, %s418, %s403, 128, 128, 8
        $region40: #{tpu_custom_call.1} parent=31 // pred_fallthru
          _
      $region32: #{tpu_custom_call.1} parent=5 // pred_fallthru
        _
      %p424 = scmp.le.s32.totalorder 2, %s13
      // Predicated region
      $region41: #{tpu_custom_call.1} parent=5 // pred_check
        %p425 = pneg %p424
      $region42: #{tpu_custom_call.1} parent=5 // pred_check_branch
        %427 = sbr.rel (%p425) target = $region44
      $region43: #{tpu_custom_call.1} parent=5 // pred_region
        %s428 = ssub.s32 %s13, 2
        // Predicated region
        $region45: #{tpu_custom_call.1} parent=43 // pred_check
          %p429 = pneg %p110
        $region46: #{tpu_custom_call.1} parent=43 // pred_check_branch
          %431 = sbr.rel (%p429) target = $region48
        $region47: #{tpu_custom_call.1} parent=43 // pred_region
          %s432 = sand.u32 %s95, 1
          %s433 = scalar_lea.sflag [#allocation4], %s432
          %s434 = sand.u32 %s95, 1
          %s435 = smul.addr %s434, 16
          %s436 = scalar_lea.vmem [#allocation5], %s435
          %438 = dma.done %s433, 256
        $region48: #{tpu_custom_call.1} parent=43 // pred_fallthru
          _
      $region44: #{tpu_custom_call.1} parent=5 // pred_fallthru
        _
    $region6: #{tpu_custom_call.1} parent=1 // loop_footer
      %s17 = sadd.s32 1, %s13
    $region7: #{tpu_custom_call.1} parent=1 // loop_footer_branch
      %12 = sbr.rel target = $region3
    $region8: #{tpu_custom_call.1} parent=1 // loop_exit
      _
    %439 = vsyncpa [#allocation3], 1
    %s440 = scalar_lea.sflag [#allocation3], 1
    %441 = vsyncpa %s440, 1
    %442 = vsyncpa [#allocation4], 1
    %s443 = scalar_lea.sflag [#allocation4], 1
    %444 = vsyncpa %s443, 1

</llo_original>
